<compile_context>
chip_gen: v7x
topology: tpu7x:2x2x1
jax: 0.10.0
libtpu: 0.0.40
codegen_flags: <defaults>
</compile_context>

<pallas_src>
import math
import functools

import jax
import jax.numpy as jnp
from jax.experimental import pallas as pl
from jax.experimental.pallas import tpu as pltpu


def _random_layer_kernel(*refs, num_inputs, scale):
    """One (block_b, block_d) output tile: N MXU matmuls (bf16 in, f32 acc)
    combined elementwise on the VPU (scale on the first, products after)."""
    x_refs = refs[:num_inputs]
    r_refs = refs[num_inputs:2 * num_inputs]
    o_ref = refs[2 * num_inputs]

    # First matmul, scaled by 1 / D**(1/N)  (matches the PyTorch division).
    acc = jnp.dot(x_refs[0][...], r_refs[0][...],
                  preferred_element_type=jnp.float32) * scale
    # Remaining matmuls, multiplied in elementwise.
    for i in range(1, num_inputs):
        acc = acc * jnp.dot(x_refs[i][...], r_refs[i][...],
                            preferred_element_type=jnp.float32)
    o_ref[...] = acc.astype(o_ref.dtype)


def _tpu_hw_params():
    """(vmem_capacity_bytes, num_tensorcores) with conservative fallbacks."""
    vmem_capacity = 64 * 1024 * 1024   # v7x-safe default if the query fails
    num_cores = 1
    try:
        info = pltpu.get_tpu_info()
        cap = getattr(info, "vmem_capacity_bytes", None)
        if cap:
            vmem_capacity = int(cap)
        for name in ("num_cores", "tensorcores_per_chip",
                     "num_tensorcores", "cores_per_chip"):
            val = getattr(info, name, None)
            if val:
                num_cores = int(val)
                break
    except Exception:
        pass
    return vmem_capacity, num_cores


def _vmem_footprint_bytes(block_b, input_dims, block_d, num_inputs, in_bytes):
    """VMEM estimate: double-buffered pipeline stages + in-kernel f32 temps."""
    x_bytes = sum(block_b * d for d in input_dims) * in_bytes
    r_bytes = sum(d * block_d for d in input_dims) * in_bytes
    o_bytes = block_b * block_d * 4                       # f32 output tile
    pipeline = 2 * (x_bytes + r_bytes + o_bytes)          # double buffering
    temps = (num_inputs + 1) * block_b * block_d * 4      # dot results + acc (f32)
    return pipeline + temps


def _pick_block_b(B):
    """Full batch per step unless B is large enough that the f32 accumulator
    and x/out buffers would dominate VMEM; tiles are 128-multiples (bf16-safe)."""
    if B <= 512:
        return B
    for cb in (512, 256, 128):
        if B % cb == 0:
            return cb
    return B


def _pick_block_d(block_b, input_dims, D, num_inputs, in_bytes, budget, num_cores):
    """Largest lane-aligned block_d that divides D and fits the VMEM budget;
    on single-TC chips fewer/bigger steps win, on megacore prefer an even
    number of D steps with >= 2 steps per core."""
    candidates = [c for c in (4096, 2048, 1024, 512, 256, 128)
                  if c <= D and D % c == 0]
    if not candidates:
        return D  # D < 128 or not 128-aligned: single full-width block.
    fitting = [c for c in candidates
               if _vmem_footprint_bytes(block_b, input_dims, c,
                                        num_inputs, in_bytes) <= budget]
    if not fitting:
        return candidates[-1]
    if num_cores <= 1:
        return fitting[0]
    good = [c for c in fitting
            if (D // c) % 2 == 0 and (D // c) >= 2 * num_cores]
    if good:
        return good[0]
    even = [c for c in fitting if (D // c) % 2 == 0]
    return even[0] if even else fitting[0]


def random_layer_pallas(input_list, random_matrices, output_dim, *,
                        compute_dtype=jnp.bfloat16, block_d=None, block_b=None):
    """JAX/Pallas equivalent of RandomLayer.forward(input_list)."""
    num_inputs = len(input_list)
    assert num_inputs == len(random_matrices) and num_inputs >= 1
    B = input_list[0].shape[0]
    D = output_dim
    input_dims = [x.shape[1] for x in input_list]
    out_dtype = input_list[0].dtype

    # bf16 streaming of both operands; accumulation stays f32 inside the kernel.
    xs = [x.astype(compute_dtype) for x in input_list]
    rs = [r.astype(compute_dtype) for r in random_matrices]
    in_bytes = jnp.dtype(compute_dtype).itemsize

    vmem_capacity, num_cores = _tpu_hw_params()
    budget = int(0.75 * vmem_capacity)   # headroom for compiler scratch / spills

    if block_b is None:
        block_b = _pick_block_b(B)
    assert B % block_b == 0, "block_b must divide the batch size"
    if block_d is None:
        block_d = _pick_block_d(block_b, input_dims, D, num_inputs,
                                in_bytes, budget, num_cores)
    assert D % block_d == 0, "block_d must divide output_dim"

    nd = D // block_d
    nb = B // block_b

    scale = 1.0 / math.pow(float(output_dim), 1.0 / num_inputs)
    kernel = functools.partial(_random_layer_kernel,
                               num_inputs=num_inputs, scale=scale)

    # Grid: D blocks on the OUTER axis, B blocks on the INNER axis, so each
    # R_i block index is constant across consecutive steps -> fetched from HBM
    # exactly once; x_i blocks are small and cheap to (re)fetch per B block.
    grid = (nd, nb)

    in_specs = [
        pl.BlockSpec((block_b, d), lambda j, i: (i, 0))
        for d in input_dims
    ]
    in_specs += [
        pl.BlockSpec((d, block_d), lambda j, i: (0, j))
        for d in input_dims
    ]
    out_spec = pl.BlockSpec((block_b, block_d), lambda j, i: (i, j))

    sum_d = sum(input_dims)
    cost = pl.CostEstimate(
        flops=2 * B * D * sum_d + num_inputs * B * D,
        transcendentals=0,
        bytes_accessed=in_bytes * (B * sum_d + sum_d * D) + 4 * B * D,
    )

    footprint = _vmem_footprint_bytes(block_b, input_dims, block_d,
                                      num_inputs, in_bytes)
    vmem_limit = max(footprint + (8 << 20), 32 << 20)
    vmem_limit = min(vmem_limit, int(0.9 * vmem_capacity))

    return pl.pallas_call(
        kernel,
        out_shape=jax.ShapeDtypeStruct((B, D), out_dtype),
        grid_spec=pltpu.PrefetchScalarGridSpec(
            num_scalar_prefetch=0,
            grid=grid,
            in_specs=in_specs,
            out_specs=out_spec,
        ),
        compiler_params=pltpu.CompilerParams(
            dimension_semantics=("parallel", "parallel"),
            vmem_limit_bytes=vmem_limit,
        ),
        cost_estimate=cost,
    )(*xs, *rs)


def random_layer_ref(input_list, random_matrices, output_dim):
    """Pure-JAX reference matching the PyTorch forward."""
    outs = [jnp.dot(x, r, preferred_element_type=jnp.float32)
            for x, r in zip(input_list, random_matrices)]
    ret = outs[0] / math.pow(float(output_dim), 1.0 / len(outs))
    for single in outs[1:]:
        ret = ret * single
    return ret


if __name__ == "__main__":
    key = jax.random.PRNGKey(0)

    # Small shapes consistent with the module: two inputs (features and class
    # probabilities), shared batch dim; output_dim as in CDAN (default 1024).
    B = 16
    input_dim_list = [64, 16]
    output_dim = 1024

    k_x0, k_x1, k_r0, k_r1 = jax.random.split(key, 4)
    x0 = jax.random.normal(k_x0, (B, input_dim_list[0]), dtype=jnp.float32)
    x1 = jax.random.normal(k_x1, (B, input_dim_list[1]), dtype=jnp.float32)

    # Deterministic stand-ins for torch.randn(input_dim, output_dim).
    R0 = jax.random.normal(k_r0, (input_dim_list[0], output_dim), dtype=jnp.float32)
    R1 = jax.random.normal(k_r1, (input_dim_list[1], output_dim), dtype=jnp.float32)

    inputs = [x0, x1]
    mats = [R0, R1]

    out = random_layer_pallas(inputs, mats, output_dim)
    out = jax.block_until_ready(out)
    assert out.shape == (B, output_dim)

    # Matched-precision reference (bf16 operands, f32 accumulation -- exactly
    # the math the kernel runs on the MXU).
    ref_bf16 = random_layer_ref([x.astype(jnp.bfloat16) for x in inputs],
                                [r.astype(jnp.bfloat16) for r in mats],
                                output_dim)
    assert jnp.allclose(out, ref_bf16, rtol=2e-3, atol=2e-3), \
        "mismatch vs matched-precision reference"

    # Loose sanity check against the full-f32 PyTorch semantics
    # (bf16 operand rounding only).
    ref_f32 = random_layer_ref(inputs, mats, output_dim)
    assert jnp.allclose(out, ref_f32, rtol=1.5e-1, atol=1.5e-1), \
        "mismatch vs f32 reference beyond bf16 rounding tolerance"

    print("KERNEL_OK")
</pallas_src>

<mosaic_0001>
module attributes {stable_mosaic.version = 11 : i64} {
  func.func @_random_layer_kernel(%arg0: i32, %arg1: i32, %arg2: memref<16x64xbf16, #tpu.memory_space<vmem>>, %arg3: memref<16x16xbf16, #tpu.memory_space<vmem>>, %arg4: memref<64x1024xbf16, #tpu.memory_space<vmem>>, %arg5: memref<16x1024xbf16, #tpu.memory_space<vmem>>, %arg6: memref<16x1024xf32, #tpu.memory_space<vmem>>) attributes {dimension_semantics = [#tpu.dimension_semantics<parallel>, #tpu.dimension_semantics<parallel>], iteration_bounds = array<i64: 1, 1>, scalar_prefetch = 0 : i64, scratch_operands = 0 : i64, tpu.core_type = #tpu.core_type<tc>, window_params = [{transform_indices = @transform_0, window_bounds = array<i64: 16, 64>}, {transform_indices = @transform_1, window_bounds = array<i64: 16, 16>}, {transform_indices = @transform_2, window_bounds = array<i64: 64, 1024>}, {transform_indices = @transform_3, window_bounds = array<i64: 16, 1024>}, {transform_indices = @transform_4, window_bounds = array<i64: 16, 1024>}]} {
    %c0 = arith.constant 0 : index
    %c0_0 = arith.constant 0 : index
    %0 = vector.load %arg2[%c0, %c0_0] : memref<16x64xbf16, #tpu.memory_space<vmem>>, vector<16x64xbf16>
    %c0_1 = arith.constant 0 : index
    %c0_2 = arith.constant 0 : index
    %1 = vector.load %arg4[%c0_1, %c0_2] : memref<64x1024xbf16, #tpu.memory_space<vmem>>, vector<64x1024xbf16>
    %cst = arith.constant dense<0.000000e+00> : vector<16x1024xf32>
    %2 = tpu.matmul %0, %1, %cst {dimension_numbers = #tpu.dot_dimension_numbers<[1], [0], [0], [1], [0, 0, 1, 1], [], []>} : vector<16x64xbf16>, vector<64x1024xbf16>, vector<16x1024xf32> -> vector<16x1024xf32>
    %cst_3 = arith.constant 3.125000e-02 : f32
    %3 = vector.broadcast %cst_3 : f32 to vector<16x1024xf32>
    %4 = arith.mulf %2, %3 : vector<16x1024xf32>
    %c0_4 = arith.constant 0 : index
    %c0_5 = arith.constant 0 : index
    %5 = vector.load %arg3[%c0_4, %c0_5] : memref<16x16xbf16, #tpu.memory_space<vmem>>, vector<16x16xbf16>
    %c0_6 = arith.constant 0 : index
    %c0_7 = arith.constant 0 : index
    %6 = vector.load %arg5[%c0_6, %c0_7] : memref<16x1024xbf16, #tpu.memory_space<vmem>>, vector<16x1024xbf16>
    %cst_8 = arith.constant dense<0.000000e+00> : vector<16x1024xf32>
    %7 = tpu.matmul %5, %6, %cst_8 {dimension_numbers = #tpu.dot_dimension_numbers<[1], [0], [0], [1], [0, 0, 1, 1], [], []>} : vector<16x16xbf16>, vector<16x1024xbf16>, vector<16x1024xf32> -> vector<16x1024xf32>
    %8 = arith.mulf %4, %7 : vector<16x1024xf32>
    %c0_9 = arith.constant 0 : index
    %c0_10 = arith.constant 0 : index
    %9 = vector.load %arg6[%c0_9, %c0_10] : memref<16x1024xf32, #tpu.memory_space<vmem>>, vector<16x1024xf32>
    tpu.vector_store %arg6[%c0_9, %c0_10], %8 {strides = array<i32>} : memref<16x1024xf32, #tpu.memory_space<vmem>>, vector<16x1024xf32>,
    return
  }
  func.func @transform_0(%arg0: i32, %arg1: i32) -> (i32, i32) {
    %c0_i32 = arith.constant 0 : i32
    %c0_i32_0 = arith.constant 0 : i32
    return %arg1, %c0_i32 : i32, i32
  }
  func.func @transform_1(%arg0: i32, %arg1: i32) -> (i32, i32) {
    %c0_i32 = arith.constant 0 : i32
    %c0_i32_0 = arith.constant 0 : i32
    return %arg1, %c0_i32 : i32, i32
  }
  func.func @transform_2(%arg0: i32, %arg1: i32) -> (i32, i32) {
    %c0_i32 = arith.constant 0 : i32
    %c0_i32_0 = arith.constant 0 : i32
    return %c0_i32, %arg0 : i32, i32
  }
  func.func @transform_3(%arg0: i32, %arg1: i32) -> (i32, i32) {
    %c0_i32 = arith.constant 0 : i32
    %c0_i32_0 = arith.constant 0 : i32
    return %c0_i32, %arg0 : i32, i32
  }
  func.func @transform_4(%arg0: i32, %arg1: i32) -> (i32, i32) {
    %c0_i32 = arith.constant 0 : i32
    return %arg1, %arg0 : i32, i32
  }
}

</mosaic_0001>

<llo_original>
// kernel: tpu_custom_call.1
$region0: #{tpu_custom_call.1}
  #allocation0 [shape = 'u32[]', space=smem, size = 0x4, offset = 0x4, fixed_abs, tag = 'smem constant byte address 0x4 - core index']
  #allocation1 [shape = 'u32[144,128]{1,0:T(1,128)}', space=vmem, size = 0x12000, scoped, tag = 'internal scratch']
  %s0 = inlined_call_operand.hbm [shape: bf16[16,64], index: 0, kind: input, shape index: {}]
  %s1 = inlined_call_operand.hbm [shape: bf16[16,16], index: 1, kind: input, shape index: {}]
  %s2 = inlined_call_operand.hbm [shape: bf16[64,1024], index: 2, kind: input, shape index: {}]
  %s3 = inlined_call_operand.hbm [shape: bf16[16,1024], index: 3, kind: input, shape index: {}]
  %s4 = inlined_call_operand.hbm [shape: f32[16,1024], index: 4, kind: output, shape index: {}]
  %s5 = sld [smem:[#allocation0]]
  $region42: #{tpu_custom_call.1} parent=0
    _
  %s7 = ssub.s32 1, %s5
  %s8 = scalar_select 0, %s7, %s5
  $region1: #{tpu_custom_call.1} parent=0
    #allocation2 [shape = 'u8[4096]{0}', space=vmem, size = 0x1000, scoped, tag = 'input window, operand 0, single buffered']
    #allocation3 [shape = 's32[1]{0}', space=sflag, size = 0x4, scoped, tag = 'scoped memory for tpu_custom_call.1']
    #allocation4 [shape = 's32[1]{0}', space=sflag, size = 0x4, scoped, tag = 'scoped memory for tpu_custom_call.1']
    #allocation5 [shape = 'u8[4096]{0}', space=vmem, size = 0x1000, scoped, tag = 'input window, operand 1, single buffered']
    #allocation6 [shape = 's32[1]{0}', space=sflag, size = 0x4, scoped, tag = 'scoped memory for tpu_custom_call.1']
    #allocation7 [shape = 'u8[131072]{0}', space=vmem, size = 0x20000, scoped, tag = 'input window, operand 2, single buffered']
    #allocation8 [shape = 'u8[32768]{0}', space=vmem, size = 0x8000, scoped, tag = 'input window, operand 3, single buffered']
    #allocation9 [shape = 's32[1]{0}', space=sflag, size = 0x4, scoped, tag = 'scoped memory for tpu_custom_call.1']
    #allocation10 [shape = 'u8[65536]{0}', space=vmem, size = 0x10000, scoped, tag = 'output window, operand 0, single buffered']
    %9 = vsyncpa [#allocation3], 0
    %10 = vsyncpa [#allocation6], 0
    %11 = vsyncpa [#allocation9], 0
    %12 = vsyncpa [#allocation4], 0
    // Predicated region
    $region2: #{tpu_custom_call.1} parent=1 // pred_check
      _
    $region3: #{tpu_custom_call.1} parent=1 // pred_check_branch
      %14 = sbr.rel (0) target = $region5
    $region4: #{tpu_custom_call.1} parent=1 // pred_region
      %s16 = ssub.s32 128, 128
      %17 = vsyncadd [#allocation3], %s16
      %s18 = sshll.u32 [#allocation2], 4
      %s19 = int_to_ptr.vmem [resolvable:$true] %s18
      %24 = dma.hbm_to_vmem [thread:$0]  %s0, 128, %s19, [#allocation3], 64, 64, 4
    $region5: #{tpu_custom_call.1} parent=1 // pred_fallthru
      _
    // Predicated region
    $region6: #{tpu_custom_call.1} parent=1 // pred_check
      _
    $region7: #{tpu_custom_call.1} parent=1 // pred_check_branch
      %26 = sbr.rel (0) target = $region9
    $region8: #{tpu_custom_call.1} parent=1 // pred_region
      %s28 = ssub.s32 128, 128
      %29 = vsyncadd [#allocation6], %s28
      %s30 = sshll.u32 [#allocation5], 4
      %s31 = int_to_ptr.vmem [resolvable:$true] %s30
      %36 = dma.hbm_to_vmem [thread:$0]  %s1, 128, %s31, [#allocation6], 64, 64, 4
    $region9: #{tpu_custom_call.1} parent=1 // pred_fallthru
      _
    // Predicated region
    $region10: #{tpu_custom_call.1} parent=1 // pred_check
      _
    $region11: #{tpu_custom_call.1} parent=1 // pred_check_branch
      %38 = sbr.rel (0) target = $region13
    $region12: #{tpu_custom_call.1} parent=1 // pred_region
      %s40 = ssub.s32 4096, 4096
      %41 = vsyncadd [#allocation6], %s40
      %s42 = sshll.u32 [#allocation7], 4
      %s43 = int_to_ptr.vmem [resolvable:$true] %s42
      %48 = dma.hbm_to_vmem [thread:$0]  %s2, 4096, %s43, [#allocation6], 512, 512, 32
    $region13: #{tpu_custom_call.1} parent=1 // pred_fallthru
      _
    // Predicated region
    $region14: #{tpu_custom_call.1} parent=1 // pred_check
      _
    $region15: #{tpu_custom_call.1} parent=1 // pred_check_branch
      %50 = sbr.rel (0) target = $region17
    $region16: #{tpu_custom_call.1} parent=1 // pred_region
      %s52 = ssub.s32 1024, 1024
      %53 = vsyncadd [#allocation9], %s52
      %s54 = sshll.u32 [#allocation8], 4
      %s55 = int_to_ptr.vmem [resolvable:$true] %s54
      %60 = dma.hbm_to_vmem [thread:$0]  %s3, 1024, %s55, [#allocation9], 512, 512, 32
    $region17: #{tpu_custom_call.1} parent=1 // pred_fallthru
      _
    // Predicated region
    $region18: #{tpu_custom_call.1} parent=1 // pred_check
      _
    $region19: #{tpu_custom_call.1} parent=1 // pred_check_branch
      %62 = sbr.rel (0) target = $region21
    $region20: #{tpu_custom_call.1} parent=1 // pred_region
      %63 = dma.done [#allocation3], 128
    $region21: #{tpu_custom_call.1} parent=1 // pred_fallthru
      _
    // Predicated region
    $region22: #{tpu_custom_call.1} parent=1 // pred_check
      _
    $region23: #{tpu_custom_call.1} parent=1 // pred_check_branch
      %65 = sbr.rel (0) target = $region25
    $region24: #{tpu_custom_call.1} parent=1 // pred_region
      %66 = dma.done [#allocation6], 128
    $region25: #{tpu_custom_call.1} parent=1 // pred_fallthru
      _
    // Predicated region
    $region26: #{tpu_custom_call.1} parent=1 // pred_check
      _
    $region27: #{tpu_custom_call.1} parent=1 // pred_check_branch
      %68 = sbr.rel (0) target = $region29
    $region28: #{tpu_custom_call.1} parent=1 // pred_region
      %69 = dma.done [#allocation6], 4096
    $region29: #{tpu_custom_call.1} parent=1 // pred_fallthru
      _
    // Predicated region
    $region30: #{tpu_custom_call.1} parent=1 // pred_check
      _
    $region31: #{tpu_custom_call.1} parent=1 // pred_check_branch
      %71 = sbr.rel (0) target = $region33
    $region32: #{tpu_custom_call.1} parent=1 // pred_region
      %72 = dma.done [#allocation9], 1024
    $region33: #{tpu_custom_call.1} parent=1 // pred_fallthru
      _
    %v74 = vld [vmem:[#allocation2] sm:$0xf]
    %v75 = vld [vmem:[#allocation2 + $0x4] sm:$0xf]
    %v76 = vld [vmem:[#allocation7] sm:$0xff]
    %v77 = vld [vmem:[#allocation7 + $0x8] sm:$0xff]
    %v78 = vld [vmem:[#allocation7 + $0x10] sm:$0xff]
    %v79 = vld [vmem:[#allocation7 + $0x18] sm:$0xff]
    %v80 = vld [vmem:[#allocation7 + $0x20] sm:$0xff]
    %v81 = vld [vmem:[#allocation7 + $0x28] sm:$0xff]
    %v82 = vld [vmem:[#allocation7 + $0x30] sm:$0xff]
    %v83 = vld [vmem:[#allocation7 + $0x38] sm:$0xff]
    %v84 = vld [vmem:[#allocation7 + $0x40] sm:$0xff]
    %v85 = vld [vmem:[#allocation7 + $0x48] sm:$0xff]
    %v86 = vld [vmem:[#allocation7 + $0x50] sm:$0xff]
    %v87 = vld [vmem:[#allocation7 + $0x58] sm:$0xff]
    %v88 = vld [vmem:[#allocation7 + $0x60] sm:$0xff]
    %v89 = vld [vmem:[#allocation7 + $0x68] sm:$0xff]
    %v90 = vld [vmem:[#allocation7 + $0x70] sm:$0xff]
    %v91 = vld [vmem:[#allocation7 + $0x78] sm:$0xff]
    %v92 = vld [vmem:[#allocation7 + $0x80] sm:$0xff]
    %v93 = vld [vmem:[#allocation7 + $0x88] sm:$0xff]
    %v94 = vld [vmem:[#allocation7 + $0x90] sm:$0xff]
    %v95 = vld [vmem:[#allocation7 + $0x98] sm:$0xff]
    %v96 = vld [vmem:[#allocation7 + $0xa0] sm:$0xff]
    %v97 = vld [vmem:[#allocation7 + $0xa8] sm:$0xff]
    %v98 = vld [vmem:[#allocation7 + $0xb0] sm:$0xff]
    %v99 = vld [vmem:[#allocation7 + $0xb8] sm:$0xff]
    %v100 = vld [vmem:[#allocation7 + $0xc0] sm:$0xff]
    %v101 = vld [vmem:[#allocation7 + $0xc8] sm:$0xff]
    %v102 = vld [vmem:[#allocation7 + $0xd0] sm:$0xff]
    %v103 = vld [vmem:[#allocation7 + $0xd8] sm:$0xff]
    %v104 = vld [vmem:[#allocation7 + $0xe0] sm:$0xff]
    %v105 = vld [vmem:[#allocation7 + $0xe8] sm:$0xff]
    %v106 = vld [vmem:[#allocation7 + $0xf0] sm:$0xff]
    %v107 = vld [vmem:[#allocation7 + $0xf8] sm:$0xff]
    %v110 = vunpack.c.l.b16 %v74
    %v111 = vunpack.c.l.b16 %v75
    %v112 = vpack.c.b16 %v111, %v110
    %v145 = vunpack.c.l.b16 %v76
    %v146 = vunpack.c.h.b16 %v76
    %v147 = vunpack.c.l.b16 %v77
    %v148 = vunpack.c.h.b16 %v77
    %v149 = vunpack.c.l.b16 %v78
    %v150 = vunpack.c.h.b16 %v78
    %v151 = vunpack.c.l.b16 %v79
    %v152 = vunpack.c.h.b16 %v79
    %v153 = vunpack.c.l.b16 %v80
    %v154 = vunpack.c.h.b16 %v80
    %v155 = vunpack.c.l.b16 %v81
    %v156 = vunpack.c.h.b16 %v81
    %v157 = vunpack.c.l.b16 %v82
    %v158 = vunpack.c.h.b16 %v82
    %v159 = vunpack.c.l.b16 %v83
    %v160 = vunpack.c.h.b16 %v83
    %v161 = vunpack.c.l.b16 %v84
    %v162 = vunpack.c.h.b16 %v84
    %v163 = vunpack.c.l.b16 %v85
    %v164 = vunpack.c.h.b16 %v85
    %v165 = vunpack.c.l.b16 %v86
    %v166 = vunpack.c.h.b16 %v86
    %v167 = vunpack.c.l.b16 %v87
    %v168 = vunpack.c.h.b16 %v87
    %v169 = vunpack.c.l.b16 %v88
    %v170 = vunpack.c.h.b16 %v88
    %v171 = vunpack.c.l.b16 %v89
    %v172 = vunpack.c.h.b16 %v89
    %v173 = vunpack.c.l.b16 %v90
    %v174 = vunpack.c.h.b16 %v90
    %v175 = vunpack.c.l.b16 %v91
    %v176 = vunpack.c.h.b16 %v91
    %v177 = vunpack.c.l.b16 %v92
    %v178 = vunpack.c.h.b16 %v92
    %v179 = vunpack.c.l.b16 %v93
    %v180 = vunpack.c.h.b16 %v93
    %v181 = vunpack.c.l.b16 %v94
    %v182 = vunpack.c.h.b16 %v94
    %v183 = vunpack.c.l.b16 %v95
    %v184 = vunpack.c.h.b16 %v95
    %v185 = vunpack.c.l.b16 %v96
    %v186 = vunpack.c.h.b16 %v96
    %v187 = vunpack.c.l.b16 %v97
    %v188 = vunpack.c.h.b16 %v97
    %v189 = vunpack.c.l.b16 %v98
    %v190 = vunpack.c.h.b16 %v98
    %v191 = vunpack.c.l.b16 %v99
    %v192 = vunpack.c.h.b16 %v99
    %v193 = vunpack.c.l.b16 %v100
    %v194 = vunpack.c.h.b16 %v100
    %v195 = vunpack.c.l.b16 %v101
    %v196 = vunpack.c.h.b16 %v101
    %v197 = vunpack.c.l.b16 %v102
    %v198 = vunpack.c.h.b16 %v102
    %v199 = vunpack.c.l.b16 %v103
    %v200 = vunpack.c.h.b16 %v103
    %v201 = vunpack.c.l.b16 %v104
    %v202 = vunpack.c.h.b16 %v104
    %v203 = vunpack.c.l.b16 %v105
    %v204 = vunpack.c.h.b16 %v105
    %v205 = vunpack.c.l.b16 %v106
    %v206 = vunpack.c.h.b16 %v106
    %v207 = vunpack.c.l.b16 %v107
    %v208 = vunpack.c.h.b16 %v107
    %v209 = vpack.c.b16 %v153, %v145
    %v210 = vpack.c.b16 %v154, %v146
    %v211 = vpack.c.b16 %v155, %v147
    %v212 = vpack.c.b16 %v156, %v148
    %v213 = vpack.c.b16 %v157, %v149
    %v214 = vpack.c.b16 %v158, %v150
    %v215 = vpack.c.b16 %v159, %v151
    %v216 = vpack.c.b16 %v160, %v152
    %v217 = vpack.c.b16 %v169, %v161
    %v218 = vpack.c.b16 %v170, %v162
    %v219 = vpack.c.b16 %v171, %v163
    %v220 = vpack.c.b16 %v172, %v164
    %v221 = vpack.c.b16 %v173, %v165
    %v222 = vpack.c.b16 %v174, %v166
    %v223 = vpack.c.b16 %v175, %v167
    %v224 = vpack.c.b16 %v176, %v168
    %v225 = vpack.c.b16 %v185, %v177
    %v226 = vpack.c.b16 %v186, %v178
    %v227 = vpack.c.b16 %v187, %v179
    %v228 = vpack.c.b16 %v188, %v180
    %v229 = vpack.c.b16 %v189, %v181
    %v230 = vpack.c.b16 %v190, %v182
    %v231 = vpack.c.b16 %v191, %v183
    %v232 = vpack.c.b16 %v192, %v184
    %v233 = vpack.c.b16 %v201, %v193
    %v234 = vpack.c.b16 %v202, %v194
    %v235 = vpack.c.b16 %v203, %v195
    %v236 = vpack.c.b16 %v204, %v196
    %v237 = vpack.c.b16 %v205, %v197
    %v238 = vpack.c.b16 %v206, %v198
    %v239 = vpack.c.b16 %v207, %v199
    %v240 = vpack.c.b16 %v208, %v200
    %vm273 = vcmask 523264
    %v275 = vsel %vm273, %v112, 0
    %277 = vmatprep.subr.bf16.mxu0 %v210
    %278 = vmatpush1.bf16.msra.mxu0 %v209
    %279 = vmatprep.subr.bf16.mxu0 %v218
    %280 = vmatpush1.bf16.msra.mxu0 %v217
    %281 = vmatprep.subr.bf16.mxu0 %v226
    %282 = vmatpush1.bf16.msra.mxu0 %v225
    %283 = vmatprep.subr.bf16.mxu0 %v234
    %284 = vmatpush1.bf16.msra.mxu0 %v233
    %285 = vmatprep.subr.bf16.mxu0 0
    %286 = vmatpush1.bf16.msra.mxu0 0
    %287 = vmatprep.subr.bf16.mxu0 0
    %288 = vmatpush1.bf16.msra.mxu0 0
    %289 = vmatprep.subr.bf16.mxu0 0
    %290 = vmatpush1.bf16.msra.mxu0 0
    %291 = vmatprep.subr.bf16.mxu0 0
    %292 = vmatpush1.bf16.msra.mxu0 0
    %293 = vmatprep.subr.bf16.mxu0 0
    %294 = vmatpush1.bf16.msra.mxu0 0
    %295 = vmatprep.subr.bf16.mxu0 0
    %296 = vmatpush1.bf16.msra.mxu0 0
    %297 = vmatprep.subr.bf16.mxu0 0
    %298 = vmatpush1.bf16.msra.mxu0 0
    %299 = vmatprep.subr.bf16.mxu0 0
    %300 = vmatpush1.bf16.msra.mxu0 0
    %301 = vmatprep.subr.bf16.mxu0 0
    %302 = vmatpush1.bf16.msra.mxu0 0
    %303 = vmatprep.subr.bf16.mxu0 0
    %304 = vmatpush1.bf16.msra.mxu0 0
    %305 = vmatprep.subr.bf16.mxu0 0
    %306 = vmatpush1.bf16.msra.mxu0 0
    %307 = vmatprep.subr.bf16.mxu0 0
    %308 = vmatpush1.bf16.msra.mxu0 0
    %309 = vmatprep.mubr.bf16.mxu0 0
    %310 = vmatmul.mubr.bf16.gmra.mrb[0].mxu0 %v275
    %v311 = vpop.f32.mrb[0].mxu0
    %v312 = vadd.f32 0.0, %v311
    %v313 = vpop.f32.mrb[0].mxu0
    %v314 = vadd.f32 0.0, %v313
    %v315 = vpop.f32.mrb[0].mxu0
    %v316 = vadd.f32 0.0, %v315
    %v317 = vpop.f32.mrb[0].mxu0
    %v318 = vadd.f32 0.0, %v317
    %319 = vdwg.mxu0
    %320 = vmatprep.subr.bf16.mxu0 %v212
    %321 = vmatpush1.bf16.msra.mxu0 %v211
    %322 = vmatprep.subr.bf16.mxu0 %v220
    %323 = vmatpush1.bf16.msra.mxu0 %v219
    %324 = vmatprep.subr.bf16.mxu0 %v228
    %325 = vmatpush1.bf16.msra.mxu0 %v227
    %326 = vmatprep.subr.bf16.mxu0 %v236
    %327 = vmatpush1.bf16.msra.mxu0 %v235
    %328 = vmatprep.subr.bf16.mxu0 0
    %329 = vmatpush1.bf16.msra.mxu0 0
    %330 = vmatprep.subr.bf16.mxu0 0
    %331 = vmatpush1.bf16.msra.mxu0 0
    %332 = vmatprep.subr.bf16.mxu0 0
    %333 = vmatpush1.bf16.msra.mxu0 0
    %334 = vmatprep.subr.bf16.mxu0 0
    %335 = vmatpush1.bf16.msra.mxu0 0
    %336 = vmatprep.subr.bf16.mxu0 0
    %337 = vmatpush1.bf16.msra.mxu0 0
    %338 = vmatprep.subr.bf16.mxu0 0
    %339 = vmatpush1.bf16.msra.mxu0 0
    %340 = vmatprep.subr.bf16.mxu0 0
    %341 = vmatpush1.bf16.msra.mxu0 0
    %342 = vmatprep.subr.bf16.mxu0 0
    %343 = vmatpush1.bf16.msra.mxu0 0
    %344 = vmatprep.subr.bf16.mxu0 0
    %345 = vmatpush1.bf16.msra.mxu0 0
    %346 = vmatprep.subr.bf16.mxu0 0
    %347 = vmatpush1.bf16.msra.mxu0 0
    %348 = vmatprep.subr.bf16.mxu0 0
    %349 = vmatpush1.bf16.msra.mxu0 0
    %350 = vmatprep.subr.bf16.mxu0 0
    %351 = vmatpush1.bf16.msra.mxu0 0
    %352 = vmatprep.mubr.bf16.mxu0 0
    %353 = vmatmul.mubr.bf16.gmra.mrb[0].mxu0 %v275
    %v354 = vpop.f32.mrb[0].mxu0
    %v355 = vadd.f32 0.0, %v354
    %v356 = vpop.f32.mrb[0].mxu0
    %v357 = vadd.f32 0.0, %v356
    %v358 = vpop.f32.mrb[0].mxu0
    %v359 = vadd.f32 0.0, %v358
    %v360 = vpop.f32.mrb[0].mxu0
    %v361 = vadd.f32 0.0, %v360
    %362 = vdwg.mxu0
    %363 = vmatprep.subr.bf16.mxu0 %v214
    %364 = vmatpush1.bf16.msra.mxu0 %v213
    %365 = vmatprep.subr.bf16.mxu0 %v222
    %366 = vmatpush1.bf16.msra.mxu0 %v221
    %367 = vmatprep.subr.bf16.mxu0 %v230
    %368 = vmatpush1.bf16.msra.mxu0 %v229
    %369 = vmatprep.subr.bf16.mxu0 %v238
    %370 = vmatpush1.bf16.msra.mxu0 %v237
    %371 = vmatprep.subr.bf16.mxu0 0
    %372 = vmatpush1.bf16.msra.mxu0 0
    %373 = vmatprep.subr.bf16.mxu0 0
    %374 = vmatpush1.bf16.msra.mxu0 0
    %375 = vmatprep.subr.bf16.mxu0 0
    %376 = vmatpush1.bf16.msra.mxu0 0
    %377 = vmatprep.subr.bf16.mxu0 0
    %378 = vmatpush1.bf16.msra.mxu0 0
    %379 = vmatprep.subr.bf16.mxu0 0
    %380 = vmatpush1.bf16.msra.mxu0 0
    %381 = vmatprep.subr.bf16.mxu0 0
    %382 = vmatpush1.bf16.msra.mxu0 0
    %383 = vmatprep.subr.bf16.mxu0 0
    %384 = vmatpush1.bf16.msra.mxu0 0
    %385 = vmatprep.subr.bf16.mxu0 0
    %386 = vmatpush1.bf16.msra.mxu0 0
    %387 = vmatprep.subr.bf16.mxu0 0
    %388 = vmatpush1.bf16.msra.mxu0 0
    %389 = vmatprep.subr.bf16.mxu0 0
    %390 = vmatpush1.bf16.msra.mxu0 0
    %391 = vmatprep.subr.bf16.mxu0 0
    %392 = vmatpush1.bf16.msra.mxu0 0
    %393 = vmatprep.subr.bf16.mxu0 0
    %394 = vmatpush1.bf16.msra.mxu0 0
    %395 = vmatprep.mubr.bf16.mxu0 0
    %396 = vmatmul.mubr.bf16.gmra.mrb[0].mxu0 %v275
    %v397 = vpop.f32.mrb[0].mxu0
    %v398 = vadd.f32 0.0, %v397
    %v399 = vpop.f32.mrb[0].mxu0
    %v400 = vadd.f32 0.0, %v399
    %v401 = vpop.f32.mrb[0].mxu0
    %v402 = vadd.f32 0.0, %v401
    %v403 = vpop.f32.mrb[0].mxu0
    %v404 = vadd.f32 0.0, %v403
    %405 = vdwg.mxu0
    %406 = vmatprep.subr.bf16.mxu0 %v216
    %407 = vmatpush1.bf16.msra.mxu0 %v215
    %408 = vmatprep.subr.bf16.mxu0 %v224
    %409 = vmatpush1.bf16.msra.mxu0 %v223
    %410 = vmatprep.subr.bf16.mxu0 %v232
    %411 = vmatpush1.bf16.msra.mxu0 %v231
    %412 = vmatprep.subr.bf16.mxu0 %v240
    %413 = vmatpush1.bf16.msra.mxu0 %v239
    %414 = vmatprep.subr.bf16.mxu0 0
    %415 = vmatpush1.bf16.msra.mxu0 0
    %416 = vmatprep.subr.bf16.mxu0 0
    %417 = vmatpush1.bf16.msra.mxu0 0
    %418 = vmatprep.subr.bf16.mxu0 0
    %419 = vmatpush1.bf16.msra.mxu0 0
    %420 = vmatprep.subr.bf16.mxu0 0
    %421 = vmatpush1.bf16.msra.mxu0 0
    %422 = vmatprep.subr.bf16.mxu0 0
    %423 = vmatpush1.bf16.msra.mxu0 0
    %424 = vmatprep.subr.bf16.mxu0 0
    %425 = vmatpush1.bf16.msra.mxu0 0
    %426 = vmatprep.subr.bf16.mxu0 0
    %427 = vmatpush1.bf16.msra.mxu0 0
    %428 = vmatprep.subr.bf16.mxu0 0
    %429 = vmatpush1.bf16.msra.mxu0 0
    %430 = vmatprep.subr.bf16.mxu0 0
    %431 = vmatpush1.bf16.msra.mxu0 0
    %432 = vmatprep.subr.bf16.mxu0 0
    %433 = vmatpush1.bf16.msra.mxu0 0
    %434 = vmatprep.subr.bf16.mxu0 0
    %435 = vmatpush1.bf16.msra.mxu0 0
    %436 = vmatprep.subr.bf16.mxu0 0
    %437 = vmatpush1.bf16.msra.mxu0 0
    %438 = vmatprep.mubr.bf16.mxu0 0
    %439 = vmatmul.mubr.bf16.gmra.mrb[0].mxu0 %v275
    %v440 = vpop.f32.mrb[0].mxu0
    %v441 = vadd.f32 0.0, %v440
    %v442 = vpop.f32.mrb[0].mxu0
    %v443 = vadd.f32 0.0, %v442
    %v444 = vpop.f32.mrb[0].mxu0
    %v445 = vadd.f32 0.0, %v444
    %v446 = vpop.f32.mrb[0].mxu0
    %v447 = vadd.f32 0.0, %v446
    %448 = vdwg.mxu0
    %v449 = vmul.f32 %v312, 0.03125
    %v450 = vmul.f32 %v314, 0.03125
    %v451 = vmul.f32 %v355, 0.03125
    %v452 = vmul.f32 %v357, 0.03125
    %v453 = vmul.f32 %v398, 0.03125
    %v454 = vmul.f32 %v400, 0.03125
    %v455 = vmul.f32 %v441, 0.03125
    %v456 = vmul.f32 %v443, 0.03125
    %v457 = vmul.f32 %v316, 0.03125
    %v458 = vmul.f32 %v318, 0.03125
    %v459 = vmul.f32 %v359, 0.03125
    %v460 = vmul.f32 %v361, 0.03125
    %v461 = vmul.f32 %v402, 0.03125
    %v462 = vmul.f32 %v404, 0.03125
    %v463 = vmul.f32 %v445, 0.03125
    %v464 = vmul.f32 %v447, 0.03125
    %v465 = vld [vmem:[#allocation5] sm:$0xf]
    %v466 = vld [vmem:[#allocation5 + $0x4] sm:$0xf]
    %v467 = vld [vmem:[#allocation8] sm:$0xff]
    %v468 = vld [vmem:[#allocation8 + $0x8] sm:$0xff]
    %v469 = vld [vmem:[#allocation8 + $0x10] sm:$0xff]
    %v470 = vld [vmem:[#allocation8 + $0x18] sm:$0xff]
    %v471 = vld [vmem:[#allocation8 + $0x20] sm:$0xff]
    %v472 = vld [vmem:[#allocation8 + $0x28] sm:$0xff]
    %v473 = vld [vmem:[#allocation8 + $0x30] sm:$0xff]
    %v474 = vld [vmem:[#allocation8 + $0x38] sm:$0xff]
    %v477 = vunpack.c.l.b16 %v465
    %v478 = vunpack.c.l.b16 %v466
    %v479 = vpack.c.b16 %v478, %v477
    %v488 = vunpack.c.l.b16 %v467
    %v489 = vunpack.c.h.b16 %v467
    %v490 = vunpack.c.l.b16 %v468
    %v491 = vunpack.c.h.b16 %v468
    %v492 = vunpack.c.l.b16 %v469
    %v493 = vunpack.c.h.b16 %v469
    %v494 = vunpack.c.l.b16 %v470
    %v495 = vunpack.c.h.b16 %v470
    %v496 = vunpack.c.l.b16 %v471
    %v497 = vunpack.c.h.b16 %v471
    %v498 = vunpack.c.l.b16 %v472
    %v499 = vunpack.c.h.b16 %v472
    %v500 = vunpack.c.l.b16 %v473
    %v501 = vunpack.c.h.b16 %v473
    %v502 = vunpack.c.l.b16 %v474
    %v503 = vunpack.c.h.b16 %v474
    %v504 = vpack.c.b16 %v496, %v488
    %v505 = vpack.c.b16 %v497, %v489
    %v506 = vpack.c.b16 %v498, %v490
    %v507 = vpack.c.b16 %v499, %v491
    %v508 = vpack.c.b16 %v500, %v492
    %v509 = vpack.c.b16 %v501, %v493
    %v510 = vpack.c.b16 %v502, %v494
    %v511 = vpack.c.b16 %v503, %v495
    %vm520 = vcmask 130048
    %v522 = vsel %vm520, %v479, 0
    %524 = vmatprep.subr.bf16.mxu0 %v505
    %525 = vmatpush1.bf16.msra.mxu0 %v504
    %526 = vmatprep.subr.bf16.mxu0 0
    %527 = vmatpush1.bf16.msra.mxu0 0
    %528 = vmatprep.subr.bf16.mxu0 0
    %529 = vmatpush1.bf16.msra.mxu0 0
    %530 = vmatprep.subr.bf16.mxu0 0
    %531 = vmatpush1.bf16.msra.mxu0 0
    %532 = vmatprep.subr.bf16.mxu0 0
    %533 = vmatpush1.bf16.msra.mxu0 0
    %534 = vmatprep.subr.bf16.mxu0 0
    %535 = vmatpush1.bf16.msra.mxu0 0
    %536 = vmatprep.subr.bf16.mxu0 0
    %537 = vmatpush1.bf16.msra.mxu0 0
    %538 = vmatprep.subr.bf16.mxu0 0
    %539 = vmatpush1.bf16.msra.mxu0 0
    %540 = vmatprep.subr.bf16.mxu0 0
    %541 = vmatpush1.bf16.msra.mxu0 0
    %542 = vmatprep.subr.bf16.mxu0 0
    %543 = vmatpush1.bf16.msra.mxu0 0
    %544 = vmatprep.subr.bf16.mxu0 0
    %545 = vmatpush1.bf16.msra.mxu0 0
    %546 = vmatprep.subr.bf16.mxu0 0
    %547 = vmatpush1.bf16.msra.mxu0 0
    %548 = vmatprep.subr.bf16.mxu0 0
    %549 = vmatpush1.bf16.msra.mxu0 0
    %550 = vmatprep.subr.bf16.mxu0 0
    %551 = vmatpush1.bf16.msra.mxu0 0
    %552 = vmatprep.subr.bf16.mxu0 0
    %553 = vmatpush1.bf16.msra.mxu0 0
    %554 = vmatprep.subr.bf16.mxu0 0
    %555 = vmatpush1.bf16.msra.mxu0 0
    %556 = vmatprep.mubr.bf16.mxu0 0
    %557 = vmatmul.mubr.bf16.gmra.mrb[0].mxu0 %v522
    %v558 = vpop.f32.mrb[0].mxu0
    %v559 = vadd.f32 0.0, %v558
    %v560 = vpop.f32.mrb[0].mxu0
    %v561 = vadd.f32 0.0, %v560
    %v562 = vpop.f32.mrb[0].mxu0
    %v563 = vadd.f32 0.0, %v562
    %v564 = vpop.f32.mrb[0].mxu0
    %v565 = vadd.f32 0.0, %v564
    %566 = vdwg.mxu0
    %567 = vmatprep.subr.bf16.mxu0 %v507
    %568 = vmatpush1.bf16.msra.mxu0 %v506
    %569 = vmatprep.subr.bf16.mxu0 0
    %570 = vmatpush1.bf16.msra.mxu0 0
    %571 = vmatprep.subr.bf16.mxu0 0
    %572 = vmatpush1.bf16.msra.mxu0 0
    %573 = vmatprep.subr.bf16.mxu0 0
    %574 = vmatpush1.bf16.msra.mxu0 0
    %575 = vmatprep.subr.bf16.mxu0 0
    %576 = vmatpush1.bf16.msra.mxu0 0
    %577 = vmatprep.subr.bf16.mxu0 0
    %578 = vmatpush1.bf16.msra.mxu0 0
    %579 = vmatprep.subr.bf16.mxu0 0
    %580 = vmatpush1.bf16.msra.mxu0 0
    %581 = vmatprep.subr.bf16.mxu0 0
    %582 = vmatpush1.bf16.msra.mxu0 0
    %583 = vmatprep.subr.bf16.mxu0 0
    %584 = vmatpush1.bf16.msra.mxu0 0
    %585 = vmatprep.subr.bf16.mxu0 0
    %586 = vmatpush1.bf16.msra.mxu0 0
    %587 = vmatprep.subr.bf16.mxu0 0
    %588 = vmatpush1.bf16.msra.mxu0 0
    %589 = vmatprep.subr.bf16.mxu0 0
    %590 = vmatpush1.bf16.msra.mxu0 0
    %591 = vmatprep.subr.bf16.mxu0 0
    %592 = vmatpush1.bf16.msra.mxu0 0
    %593 = vmatprep.subr.bf16.mxu0 0
    %594 = vmatpush1.bf16.msra.mxu0 0
    %595 = vmatprep.subr.bf16.mxu0 0
    %596 = vmatpush1.bf16.msra.mxu0 0
    %597 = vmatprep.subr.bf16.mxu0 0
    %598 = vmatpush1.bf16.msra.mxu0 0
    %599 = vmatprep.mubr.bf16.mxu0 0
    %600 = vmatmul.mubr.bf16.gmra.mrb[0].mxu0 %v522
    %v601 = vpop.f32.mrb[0].mxu0
    %v602 = vadd.f32 0.0, %v601
    %v603 = vpop.f32.mrb[0].mxu0
    %v604 = vadd.f32 0.0, %v603
    %v605 = vpop.f32.mrb[0].mxu0
    %v606 = vadd.f32 0.0, %v605
    %v607 = vpop.f32.mrb[0].mxu0
    %v608 = vadd.f32 0.0, %v607
    %609 = vdwg.mxu0
    %610 = vmatprep.subr.bf16.mxu0 %v509
    %611 = vmatpush1.bf16.msra.mxu0 %v508
    %612 = vmatprep.subr.bf16.mxu0 0
    %613 = vmatpush1.bf16.msra.mxu0 0
    %614 = vmatprep.subr.bf16.mxu0 0
    %615 = vmatpush1.bf16.msra.mxu0 0
    %616 = vmatprep.subr.bf16.mxu0 0
    %617 = vmatpush1.bf16.msra.mxu0 0
    %618 = vmatprep.subr.bf16.mxu0 0
    %619 = vmatpush1.bf16.msra.mxu0 0
    %620 = vmatprep.subr.bf16.mxu0 0
    %621 = vmatpush1.bf16.msra.mxu0 0
    %622 = vmatprep.subr.bf16.mxu0 0
    %623 = vmatpush1.bf16.msra.mxu0 0
    %624 = vmatprep.subr.bf16.mxu0 0
    %625 = vmatpush1.bf16.msra.mxu0 0
    %626 = vmatprep.subr.bf16.mxu0 0
    %627 = vmatpush1.bf16.msra.mxu0 0
    %628 = vmatprep.subr.bf16.mxu0 0
    %629 = vmatpush1.bf16.msra.mxu0 0
    %630 = vmatprep.subr.bf16.mxu0 0
    %631 = vmatpush1.bf16.msra.mxu0 0
    %632 = vmatprep.subr.bf16.mxu0 0
    %633 = vmatpush1.bf16.msra.mxu0 0
    %634 = vmatprep.subr.bf16.mxu0 0
    %635 = vmatpush1.bf16.msra.mxu0 0
    %636 = vmatprep.subr.bf16.mxu0 0
    %637 = vmatpush1.bf16.msra.mxu0 0
    %638 = vmatprep.subr.bf16.mxu0 0
    %639 = vmatpush1.bf16.msra.mxu0 0
    %640 = vmatprep.subr.bf16.mxu0 0
    %641 = vmatpush1.bf16.msra.mxu0 0
    %642 = vmatprep.mubr.bf16.mxu0 0
    %643 = vmatmul.mubr.bf16.gmra.mrb[0].mxu0 %v522
    %v644 = vpop.f32.mrb[0].mxu0
    %v645 = vadd.f32 0.0, %v644
    %v646 = vpop.f32.mrb[0].mxu0
    %v647 = vadd.f32 0.0, %v646
    %v648 = vpop.f32.mrb[0].mxu0
    %v649 = vadd.f32 0.0, %v648
    %v650 = vpop.f32.mrb[0].mxu0
    %v651 = vadd.f32 0.0, %v650
    %652 = vdwg.mxu0
    %653 = vmatprep.subr.bf16.mxu0 %v511
    %654 = vmatpush1.bf16.msra.mxu0 %v510
    %655 = vmatprep.subr.bf16.mxu0 0
    %656 = vmatpush1.bf16.msra.mxu0 0
    %657 = vmatprep.subr.bf16.mxu0 0
    %658 = vmatpush1.bf16.msra.mxu0 0
    %659 = vmatprep.subr.bf16.mxu0 0
    %660 = vmatpush1.bf16.msra.mxu0 0
    %661 = vmatprep.subr.bf16.mxu0 0
    %662 = vmatpush1.bf16.msra.mxu0 0
    %663 = vmatprep.subr.bf16.mxu0 0
    %664 = vmatpush1.bf16.msra.mxu0 0
    %665 = vmatprep.subr.bf16.mxu0 0
    %666 = vmatpush1.bf16.msra.mxu0 0
    %667 = vmatprep.subr.bf16.mxu0 0
    %668 = vmatpush1.bf16.msra.mxu0 0
    %669 = vmatprep.subr.bf16.mxu0 0
    %670 = vmatpush1.bf16.msra.mxu0 0
    %671 = vmatprep.subr.bf16.mxu0 0
    %672 = vmatpush1.bf16.msra.mxu0 0
    %673 = vmatprep.subr.bf16.mxu0 0
    %674 = vmatpush1.bf16.msra.mxu0 0
    %675 = vmatprep.subr.bf16.mxu0 0
    %676 = vmatpush1.bf16.msra.mxu0 0
    %677 = vmatprep.subr.bf16.mxu0 0
    %678 = vmatpush1.bf16.msra.mxu0 0
    %679 = vmatprep.subr.bf16.mxu0 0
    %680 = vmatpush1.bf16.msra.mxu0 0
    %681 = vmatprep.subr.bf16.mxu0 0
    %682 = vmatpush1.bf16.msra.mxu0 0
    %683 = vmatprep.subr.bf16.mxu0 0
    %684 = vmatpush1.bf16.msra.mxu0 0
    %685 = vmatprep.mubr.bf16.mxu0 0
    %686 = vmatmul.mubr.bf16.gmra.mrb[0].mxu0 %v522
    %v687 = vpop.f32.mrb[0].mxu0
    %v688 = vadd.f32 0.0, %v687
    %v689 = vpop.f32.mrb[0].mxu0
    %v690 = vadd.f32 0.0, %v689
    %v691 = vpop.f32.mrb[0].mxu0
    %v692 = vadd.f32 0.0, %v691
    %v693 = vpop.f32.mrb[0].mxu0
    %v694 = vadd.f32 0.0, %v693
    %695 = vdwg.mxu0
    %v696 = vmul.f32 %v449, %v559
    %v697 = vmul.f32 %v450, %v561
    %v698 = vmul.f32 %v451, %v602
    %v699 = vmul.f32 %v452, %v604
    %v700 = vmul.f32 %v453, %v645
    %v701 = vmul.f32 %v454, %v647
    %v702 = vmul.f32 %v455, %v688
    %v703 = vmul.f32 %v456, %v690
    %v704 = vmul.f32 %v457, %v563
    %v705 = vmul.f32 %v458, %v565
    %v706 = vmul.f32 %v459, %v606
    %v707 = vmul.f32 %v460, %v608
    %v708 = vmul.f32 %v461, %v649
    %v709 = vmul.f32 %v462, %v651
    %v710 = vmul.f32 %v463, %v692
    %v711 = vmul.f32 %v464, %v694
    %712 = vst [vmem:[#allocation10] sm:$0xff] %v696
    %713 = vst [vmem:[#allocation10 + $0x8] sm:$0xff] %v697
    %714 = vst [vmem:[#allocation10 + $0x10] sm:$0xff] %v698
    %715 = vst [vmem:[#allocation10 + $0x18] sm:$0xff] %v699
    %716 = vst [vmem:[#allocation10 + $0x20] sm:$0xff] %v700
    %717 = vst [vmem:[#allocation10 + $0x28] sm:$0xff] %v701
    %718 = vst [vmem:[#allocation10 + $0x30] sm:$0xff] %v702
    %719 = vst [vmem:[#allocation10 + $0x38] sm:$0xff] %v703
    %720 = vst [vmem:[#allocation10 + $0x40] sm:$0xff] %v704
    %721 = vst [vmem:[#allocation10 + $0x48] sm:$0xff] %v705
    %722 = vst [vmem:[#allocation10 + $0x50] sm:$0xff] %v706
    %723 = vst [vmem:[#allocation10 + $0x58] sm:$0xff] %v707
    %724 = vst [vmem:[#allocation10 + $0x60] sm:$0xff] %v708
    %725 = vst [vmem:[#allocation10 + $0x68] sm:$0xff] %v709
    %726 = vst [vmem:[#allocation10 + $0x70] sm:$0xff] %v710
    %727 = vst [vmem:[#allocation10 + $0x78] sm:$0xff] %v711
    // Predicated region
    $region34: #{tpu_custom_call.1} parent=1 // pred_check
      _
    $region35: #{tpu_custom_call.1} parent=1 // pred_check_branch
      %729 = sbr.rel (0) target = $region37
    $region36: #{tpu_custom_call.1} parent=1 // pred_region
      %s731 = ssub.s32 2048, 2048
      %732 = vsyncadd [#allocation4], %s731
      %s733 = sshll.u32 [#allocation10], 4
      %s734 = int_to_ptr.vmem [resolvable:$true] %s733
      %739 = dma.vmem_to_hbm [thread:$0]  %s734, 2048, %s4, [#allocation4], 1024, 1024, 64
    $region37: #{tpu_custom_call.1} parent=1 // pred_fallthru
      _
    // Predicated region
    $region38: #{tpu_custom_call.1} parent=1 // pred_check
      _
    $region39: #{tpu_custom_call.1} parent=1 // pred_check_branch
      %741 = sbr.rel (0) target = $region41
    $region40: #{tpu_custom_call.1} parent=1 // pred_region
      %742 = dma.done [#allocation4], 2048
    $region41: #{tpu_custom_call.1} parent=1 // pred_fallthru
      _
    %743 = vsyncpa [#allocation3], 1
    %744 = vsyncpa [#allocation6], 1
    %745 = vsyncpa [#allocation9], 1
    %746 = vsyncpa [#allocation4], 1

</llo_original>
